<compile_context>
chip_gen: v5e
topology: v5e:2x2
jax: 0.10.0
libtpu: 0.0.40
codegen_flags: <defaults>
</compile_context>

<pallas_src>
import jax
import jax.numpy as jnp
import numpy as np
from jax.experimental import pallas as pl
from jax.experimental.pallas import tpu as pltpu


def _make_tv_kernel(hw, w, inv_count_h, sub_in_input_dtype):
    # roll semantics: roll(y, s, axis=1)[:, j] = y[:, (j - s) % hw]
    shift_right = (hw - 1) % hw    # neighbour at j + 1
    shift_down = (hw - w) % hw     # neighbour at j + w

    def kernel(y_ref, ww_ref, out_ref):
        y = y_ref[...]                                   # (TN, HW), input dtype
        y_r = pltpu.roll(y, shift_right, axis=1)         # XLU; no relayout copies
        y_d = pltpu.roll(y, shift_down, axis=1)
        if sub_in_input_dtype:
            # bf16 path: subtract at input precision (full-rate bf16 VALU on v6e/v7x),
            # cast once for square + accumulate.
            dh = (y_d - y).astype(jnp.float32)
            dw = (y_r - y).astype(jnp.float32)
        else:
            yf = y.astype(jnp.float32)
            dh = y_d.astype(jnp.float32) - yf
            dw = y_r.astype(jnp.float32) - yf
        # Vertical-pair weight (valid iff j + W stays inside the image) with the
        # 1/count_h normalizer folded in, generated on a (1, HW) iota: ~1/TN of the
        # per-element work and no VMEM operand to (double-)buffer.
        idx = jax.lax.broadcasted_iota(jnp.int32, (1, hw), 1)
        wv = jnp.where(idx < hw - w, jnp.float32(inv_count_h), jnp.float32(0.0))
        ww = ww_ref[...]                                 # (1, HW) f32, 1/count_w folded
        # Single fused masked reduction -> one f32 partial per block.
        out_ref[0, 0] = jnp.sum(dh * dh * wv + dw * dw * ww)

    return kernel


def _vmem_capacity_bytes():
    try:
        cap = getattr(pltpu.get_tpu_info(), "vmem_capacity_bytes", None)
        if cap:
            return int(cap)
    except Exception:
        pass
    return 64 << 20          # conservative default (v7x per-TensorCore VMEM)


def _choose_tile(n, hw, itemsize, vmem_cap_bytes):
    """Images (rows of the (N, HW) view) per block."""
    big_vmem = vmem_cap_bytes >= (96 << 20)                      # v5e / v6e: 128 MiB
    target_block_bytes = (4 << 20) if big_vmem else (2 << 20)    # v7x: 64 MiB physical
    # Working set per image row: double-buffered input row + ~5 f32 live
    # intermediates (y_r, y_d, dh, dw, product) materialised by the compiler.
    per_row_ws = hw * (2 * itemsize + 5 * 4)
    ws_budget = vmem_cap_bytes // 2
    tn = min(n,
             max(1, target_block_bytes // max(1, hw * itemsize)),
             max(1, ws_budget // max(1, per_row_ws)))
    # Round to the dtype's sublane packing (f32 -> 8, bf16 -> 16, int8/fp8 -> 32).
    pack = max(8, 32 // max(1, itemsize))
    if n >= 2 * pack:
        # Guarantee >= 2 blocks so the "parallel" grid axis can shard across both
        # of v7x's TensorCores.
        half = (((n + 1) // 2) + pack - 1) // pack * pack
        tn = min(tn, half)
    if tn >= n:
        return n
    tn = max(pack, (tn // pack) * pack)
    nb = -(-n // tn)
    if nb > 1 and nb % 2 == 1:
        # Prefer an even block count (balanced across two TensorCores).
        tn_even = max(pack, (-(-n // (nb + 1)) + pack - 1) // pack * pack)
        if -(-n // tn_even) % 2 == 0:
            tn = tn_even
    return tn


def l_tv_pallas(x, tv_loss_weight=1.0):
    """Total-variation loss matching the PyTorch L_TV module (NCHW input)."""
    b, c, h, w = x.shape
    n = b * c
    hw = h * w
    itemsize = jnp.dtype(x.dtype).itemsize

    y = x.reshape(n, hw)                       # free reshape; lane axis = H*W

    vmem_cap = _vmem_capacity_bytes()
    tn = _choose_tile(n, hw, itemsize, vmem_cap)
    # TODO(synk): for very large H*W (a single (tn, HW) slab exceeding the per-
    # generation VMEM budget) also tile the HW axis with a one-row (W-element) halo
    # instead of taking full flattened rows.
    n_pad = -(-n // tn) * tn
    if n_pad != n:
        # zero-padded rows contribute exactly 0 to the sum
        y = jnp.pad(y, ((0, n_pad - n), (0, 0)))
    nb = n_pad // tn

    count_h = (h - 1) * w
    count_w = h * (w - 1)
    # Guarded so degenerate H==1 / W==1 shapes don't divide by zero at trace time;
    # the corresponding diff term is empty and contributes 0 either way.
    inv_count_h = (1.0 / count_h) if count_h > 0 else 0.0
    inv_count_w = (1.0 / count_w) if count_w > 0 else 0.0

    # Horizontal-pair weight over the flattened spatial axis (trace-time constant):
    # valid iff j + 1 stays in the same image row; 1/count_w normalizer folded in.
    idx = np.arange(hw)
    ww = jnp.asarray(
        (((idx % w) != (w - 1)).astype(np.float32) * inv_count_w).reshape(1, hw))

    sub_in_input_dtype = x.dtype == jnp.bfloat16
    kernel = _make_tv_kernel(hw, w, inv_count_h, sub_in_input_dtype)

    # Scoped-VMEM limit sized for double-buffered blocks + f32 intermediates, with
    # headroom under the physical capacity (128 MiB on v5e/v6e, 64 MiB on v7x).
    vmem_limit = (96 << 20) if vmem_cap >= (96 << 20) else (48 << 20)

    partials = pl.pallas_call(
        kernel,
        out_shape=jax.ShapeDtypeStruct((nb, 1), jnp.float32),
        grid_spec=pltpu.PrefetchScalarGridSpec(
            num_scalar_prefetch=0,
            grid=(nb,),
            in_specs=[
                pl.BlockSpec((tn, hw), lambda i: (i, 0)),
                pl.BlockSpec((1, hw), lambda i: (0, 0)),
            ],
            out_specs=pl.BlockSpec((1, 1), lambda i: (i, 0),
                                   memory_space=pltpu.MemorySpace.SMEM),
        ),
        compiler_params=pltpu.CompilerParams(
            dimension_semantics=("parallel",),
            vmem_limit_bytes=vmem_limit,
        ),
        cost_estimate=pl.CostEstimate(
            flops=7 * n_pad * hw,
            transcendentals=0,
            bytes_accessed=n_pad * hw * itemsize + hw * 4 + nb * 4,
        ),
    )(y, ww)

    total = jnp.sum(partials)
    return tv_loss_weight * 2.0 * total / b


def _l_tv_ref(x, tv_loss_weight=1.0):
    b, c, h, w = x.shape
    count_h = (h - 1) * w
    count_w = h * (w - 1)
    h_tv = jnp.sum(jnp.square(x[:, :, 1:, :] - x[:, :, :-1, :]))
    w_tv = jnp.sum(jnp.square(x[:, :, :, 1:] - x[:, :, :, :-1]))
    return tv_loss_weight * 2.0 * (h_tv / count_h + w_tv / count_w) / b


if __name__ == "__main__":
    key = jax.random.PRNGKey(0)
    x = jax.random.normal(key, (2, 4, 16, 16), dtype=jnp.float32)

    loss = jax.block_until_ready(l_tv_pallas(x, tv_loss_weight=1.0))
    ref = jax.block_until_ready(_l_tv_ref(x, tv_loss_weight=1.0))

    assert jnp.allclose(loss, ref, rtol=1e-5, atol=1e-5), (loss, ref)
    print("KERNEL_OK")
</pallas_src>

<mosaic_0001>
module attributes {stable_mosaic.version = 11 : i64} {
  func.func @kernel(%arg0: i32, %arg1: memref<8x256xf32, #tpu.memory_space<vmem>>, %arg2: memref<1x256xf32, #tpu.memory_space<vmem>>, %arg3: memref<1x1xf32, #tpu.memory_space<smem>>) attributes {dimension_semantics = [#tpu.dimension_semantics<parallel>], iteration_bounds = array<i64: 1>, scalar_prefetch = 0 : i64, scratch_operands = 0 : i64, tpu.core_type = #tpu.core_type<tc>, window_params = [{transform_indices = @transform_0, window_bounds = array<i64: 8, 256>}, {pipeline_mode = #tpu.pipeline_mode<synchronous>, transform_indices = @transform_1, window_bounds = array<i64: 1, 256>}, {transform_indices = @transform_2, window_bounds = array<i64: 1, 1>}]} {
    %c0 = arith.constant 0 : index
    %c0_0 = arith.constant 0 : index
    %0 = vector.load %arg1[%c0, %c0_0] : memref<8x256xf32, #tpu.memory_space<vmem>>, vector<8x256xf32>
    %c255_i32 = arith.constant 255 : i32
    %1 = tpu.dynamic_rotate %0 by %c255_i32 dim 1 : vector<8x256xf32>, i32 -> vector<8x256xf32>
    %c240_i32 = arith.constant 240 : i32
    %2 = tpu.dynamic_rotate %0 by %c240_i32 dim 1 : vector<8x256xf32>, i32 -> vector<8x256xf32>
    %3 = arith.subf %2, %0 : vector<8x256xf32>
    %4 = arith.subf %1, %0 : vector<8x256xf32>
    %5 = tpu.iota {dimensions = array<i32: 1>} : vector<1x256xi32>
    %c240_i32_1 = arith.constant 240 : i32
    %6 = vector.broadcast %c240_i32_1 : i32 to vector<1x256xi32>
    %7 = arith.cmpi slt, %5, %6 : vector<1x256xi32>
    %cst = arith.constant 0.00416666688 : f32
    %cst_2 = arith.constant 0.000000e+00 : f32
    %8 = vector.broadcast %cst : f32 to vector<1x256xf32>
    %9 = vector.broadcast %cst_2 : f32 to vector<1x256xf32>
    %10 = arith.select %7, %8, %9 : vector<1x256xi1>, vector<1x256xf32>
    %c0_3 = arith.constant 0 : index
    %c0_4 = arith.constant 0 : index
    %11 = vector.load %arg2[%c0_3, %c0_4] : memref<1x256xf32, #tpu.memory_space<vmem>>, vector<1x256xf32>
    %12 = arith.mulf %3, %3 : vector<8x256xf32>
    %13 = vector.broadcast %10 : vector<1x256xf32> to vector<8x256xf32>
    %14 = arith.mulf %12, %13 : vector<8x256xf32>
    %15 = arith.mulf %4, %4 : vector<8x256xf32>
    %16 = vector.broadcast %11 : vector<1x256xf32> to vector<8x256xf32>
    %17 = arith.mulf %15, %16 : vector<8x256xf32>
    %18 = arith.addf %14, %17 : vector<8x256xf32>
    %19 = vector.shape_cast %18 : vector<8x256xf32> to vector<1x8x256xf32>
    %cst_5 = arith.constant dense<0.000000e+00> : vector<1xf32>
    %20 = vector.multi_reduction <add>, %19, %cst_5 [1, 2] : vector<1x8x256xf32> to vector<1xf32>
    %21 = vector.shape_cast %20 : vector<1xf32> to vector<1x1x1xf32>
    %22 = vector.extract %21[0, 0, 0] : f32 from vector<1x1x1xf32>
    %c0_6 = arith.constant 0 : index
    %c0_7 = arith.constant 0 : index
    %23 = memref.load %arg3[%c0_6, %c0_7] : memref<1x1xf32, #tpu.memory_space<smem>>
    memref.store %22, %arg3[%c0_6, %c0_7] : memref<1x1xf32, #tpu.memory_space<smem>>
    return
  }
  func.func @transform_0(%arg0: i32) -> (i32, i32) {
    %c0_i32 = arith.constant 0 : i32
    %c0_i32_0 = arith.constant 0 : i32
    return %arg0, %c0_i32 : i32, i32
  }
  func.func @transform_1(%arg0: i32) -> (i32, i32) {
    %c0_i32 = arith.constant 0 : i32
    %c0_i32_0 = arith.constant 0 : i32
    %c0_i32_1 = arith.constant 0 : i32
    return %c0_i32, %c0_i32_0 : i32, i32
  }
  func.func @transform_2(%arg0: i32) -> (i32, i32) {
    %c0_i32 = arith.constant 0 : i32
    %c0_i32_0 = arith.constant 0 : i32
    return %arg0, %c0_i32 : i32, i32
  }
}

</mosaic_0001>

<llo_original>
// kernel: tpu_custom_call.1
$region0: #{tpu_custom_call.1}
  #allocation0 [shape = 'u32[]', space=smem, size = 0x4, offset = 0x4, fixed_abs, tag = 'smem constant byte address 0x4 - core index']
  #allocation1 [shape = 'u32[72,128]{1,0:T(1,128)}', space=vmem, size = 0x9000, scoped, tag = 'internal scratch']
  %s0 = inlined_call_operand.hbm [shape: f32[8,256], index: 0, kind: input, shape index: {}]
  %s1 = inlined_call_operand.hbm [shape: f32[1,256], index: 1, kind: input, shape index: {}]
  %s2 = inlined_call_operand.hbm [shape: f32[1,1], index: 2, kind: output, shape index: {}]
  %s3 = sld [smem:[#allocation0]]
  $region26: #{tpu_custom_call.1} parent=0
    _
  %s5 = ssub.s32 1, %s3
  %s6 = scalar_select 0, %s5, %s3
  $region1: #{tpu_custom_call.1} parent=0
    #allocation2 [shape = 'u8[8192]{0}', space=vmem, size = 0x2000, scoped, tag = 'input window, operand 0, single buffered']
    #allocation3 [shape = 's32[1]{0}', space=sflag, size = 0x4, scoped, tag = 'scoped memory for tpu_custom_call.1']
    #allocation4 [shape = 's32[1]{0}', space=sflag, size = 0x4, scoped, tag = 'scoped memory for tpu_custom_call.1']
    #allocation5 [shape = 'u8[1024]{0}', space=vmem, size = 0x400, scoped, tag = 'input window, operand 1, single buffered']
    #allocation6 [shape = 's32[1]{0}', space=sflag, size = 0x4, scoped, tag = 'scoped memory for tpu_custom_call.1']
    #allocation7 [shape = 'u8[512]{0}', space=smem, size = 0x200, scoped, tag = 'output window, operand 0, single buffered']
    %7 = vsyncpa [#allocation3], 0
    %8 = vsyncpa [#allocation6], 0
    %9 = vsyncpa [#allocation4], 0
    // Predicated region
    $region2: #{tpu_custom_call.1} parent=1 // pred_check
      _
    $region3: #{tpu_custom_call.1} parent=1 // pred_check_branch
      %11 = sbr.rel (0) target = $region5
    $region4: #{tpu_custom_call.1} parent=1 // pred_region
      %13 = vsyncadd [#allocation3], 0
      %s15 = sshll.u32 %s0, 4
      %s16 = int_to_ptr.hbm [resolvable:$true] %s15
      %s17 = sshll.u32 [#allocation2], 4
      %s18 = int_to_ptr.vmem [resolvable:$true] %s17
      %20 = dma.hbm_to_vmem [thread:$0]  %s16, 256, %s18, [#allocation3]
    $region5: #{tpu_custom_call.1} parent=1 // pred_fallthru
      _
    // Predicated region
    $region6: #{tpu_custom_call.1} parent=1 // pred_check
      _
    $region7: #{tpu_custom_call.1} parent=1 // pred_check_branch
      %22 = sbr.rel (0) target = $region9
    $region8: #{tpu_custom_call.1} parent=1 // pred_region
      %24 = vsyncadd [#allocation6], 0
      %s26 = sshll.u32 %s1, 4
      %s27 = int_to_ptr.hbm [resolvable:$true] %s26
      %s28 = sshll.u32 [#allocation5], 4
      %s29 = int_to_ptr.vmem [resolvable:$true] %s28
      %31 = dma.hbm_to_vmem [thread:$0]  %s27, 32, %s29, [#allocation6]
    $region9: #{tpu_custom_call.1} parent=1 // pred_fallthru
      _
    // Predicated region
    $region10: #{tpu_custom_call.1} parent=1 // pred_check
      _
    $region11: #{tpu_custom_call.1} parent=1 // pred_check_branch
      %33 = sbr.rel (0) target = $region13
    $region12: #{tpu_custom_call.1} parent=1 // pred_region
      %35 = dma.done [#allocation3], 256
    $region13: #{tpu_custom_call.1} parent=1 // pred_fallthru
      _
    // Predicated region
    $region14: #{tpu_custom_call.1} parent=1 // pred_check
      _
    $region15: #{tpu_custom_call.1} parent=1 // pred_check_branch
      %37 = sbr.rel (0) target = $region17
    $region16: #{tpu_custom_call.1} parent=1 // pred_region
      %39 = dma.done [#allocation6], 32
    $region17: #{tpu_custom_call.1} parent=1 // pred_fallthru
      _
    %v40 = vld [vmem:[#allocation2] sm:$0xff]
    %v41 = vld [vmem:[#allocation2 + $0x8] sm:$0xff]
    %42 = vrot.lane.b32.xlu0 %v40, 127
    %v43 = vpop.permute.xlu0 %42
    %44 = vrot.lane.b32.xlu0 %v41, 127
    %v45 = vpop.permute.xlu0 %44
    %v46 = vlaneseq
    %v47 = vand.u32 %v46, 127
    %vm48 = vcmp.lt.s32.totalorder %v47, 127
    %v49 = vsel %vm48, %v43, %v45
    %v50 = vsel %vm48, %v45, %v43
    %51 = vrot.lane.b32.xlu0 %v40, 112
    %v52 = vpop.permute.xlu0 %51
    %53 = vrot.lane.b32.xlu0 %v41, 112
    %v54 = vpop.permute.xlu0 %53
    %vm55 = vcmp.lt.s32.totalorder %v47, 112
    %v56 = vsel %vm55, %v52, %v54
    %v57 = vsel %vm55, %v54, %v52
    %v58 = vsub.f32 %v56, %v40
    %v59 = vsub.f32 %v57, %v41
    %v60 = vsub.f32 %v49, %v40
    %v61 = vsub.f32 %v50, %v41
    %v62 = vadd.s32 %v47, 128
    %vm63 = vcmp.lt.s32.totalorder %v47, 240
    %vm64 = vcmp.lt.s32.totalorder %v62, 240
    %v65 = vsel %vm63, 0.004166667, 0.0
    %v66 = vsel %vm64, 0.004166667, 0.0
    %v67 = vld [vmem:[#allocation5] sm:$0x3]
    %v68 = vmul.f32 %v58, %v58
    %v69 = vmul.f32 %v59, %v59
    %v70 = vmul.f32 %v68, %v65
    %v71 = vmul.f32 %v69, %v66
    %v72 = vmul.f32 %v60, %v60
    %v73 = vmul.f32 %v61, %v61
    %v75 = vperm.slane %v67, 0
    %v76 = vperm.slane %v67, 1
    %v79 = vmul.f32 %v72, %v75
    %v80 = vmul.f32 %v73, %v76
    %v81 = vadd.f32 %v70, %v79
    %v82 = vadd.f32 %v71, %v80
    %v83 = vadd.f32 %v81, %v82
    %84 = vadd.xlane.f32.xlu0 %v83
    %v85 = vpop.xlane.xlu0 %84
    %v86 = vrot.slane %v85, 4
    %v87 = vadd.f32 %v85, %v86
    %v88 = vrot.slane %v87, 2
    %v89 = vadd.f32 %v87, %v88
    %v90 = vrot.slane %v89, 1
    %v91 = vadd.f32 %v89, %v90
    %s92 = vtos %v91
    %s93 = scalar_lea.smem [#allocation7], 0
    %94 = sst [smem:[%s93]] %s92
    // Predicated region
    $region18: #{tpu_custom_call.1} parent=1 // pred_check
      _
    $region19: #{tpu_custom_call.1} parent=1 // pred_check_branch
      %96 = sbr.rel (0) target = $region21
    $region20: #{tpu_custom_call.1} parent=1 // pred_region
      %98 = vsyncadd [#allocation4], 0
      %s100 = sshll.u32 %s2, 4
      %s101 = int_to_ptr.hbm [resolvable:$true] %s100
      %103 = dma.smem_to_hbm [#allocation7], 16, %s101, [#allocation4]
    $region21: #{tpu_custom_call.1} parent=1 // pred_fallthru
      _
    // Predicated region
    $region22: #{tpu_custom_call.1} parent=1 // pred_check
      _
    $region23: #{tpu_custom_call.1} parent=1 // pred_check_branch
      %105 = sbr.rel (0) target = $region25
    $region24: #{tpu_custom_call.1} parent=1 // pred_region
      %107 = dma.done [#allocation4], 16
    $region25: #{tpu_custom_call.1} parent=1 // pred_fallthru
      _
    %108 = sfence
    %109 = vsyncpa [#allocation3], 1
    %110 = vsyncpa [#allocation6], 1
    %111 = vsyncpa [#allocation4], 1

</llo_original>
